<compile_context>
chip_gen: v6e
topology: v6e:2x2x1
jax: 0.10.0
libtpu: 0.0.40
codegen_flags: <defaults>
</compile_context>

<pallas_src>
import jax
import jax.numpy as jnp
from jax.experimental import pallas as pl
from jax.experimental.pallas import tpu as pltpu


def _round_up(n, m):
    return ((n + m - 1) // m) * m


def _cdiv(a, b):
    return -(-a // b)


def _make_kernel(TK, D, mask_needed, w_resident):
    """Build the tile kernel for out_features == 1 (VPU row-dot, no MXU)."""

    def kernel(x_ref, w_ref, b_ref, o_ref, acc_ref):
        k = pl.program_id(1)

        @pl.when(k == 0)
        def _():
            acc_ref[...] = jnp.zeros_like(acc_ref)

        # Upcast in-register (v5e has no bf16 VPU); accumulate in f32.
        x = x_ref[...].astype(jnp.float32)            # (TB, TK)
        if w_resident:
            w = w_ref[k].astype(jnp.float32)          # (TK,) from resident (nk, TK)
        else:
            w = w_ref[0].astype(jnp.float32)          # (TK,) from streamed (1, TK)
        w = w.reshape(1, TK)

        xw = x * w                                    # (TB, TK), VPU only

        if mask_needed:
            # K-edge: x beyond D is stale VMEM (possibly NaN); mask the product,
            # not the operands, so no garbage can propagate.
            lane = jax.lax.broadcasted_iota(jnp.int32, xw.shape, 1)
            xw = jnp.where(k * TK + lane < D, xw, 0.0)

        # Lane-partial accumulation: static, 128-aligned slices -> vreg-to-vreg
        # VALU adds only.  The cross-lane (XLU) reduction is deferred to the
        # epilogue so the steady-state loop stays DMA/VALU bound.
        partial = xw[:, 0:128]
        for c in range(1, TK // 128):
            partial = partial + xw[:, c * 128:(c + 1) * 128]
        acc_ref[...] += partial                       # (TB, 128)

        @pl.when(k == pl.num_programs(1) - 1)
        def _():
            row = jnp.sum(acc_ref[...], axis=-1, keepdims=True)   # (TB, 1), XLU once
            o_ref[...] = (row + b_ref[0]).astype(o_ref.dtype)

    return kernel


def linear_forward(x, w_t, b, *, tb=512, tk=1024):
    """y = x @ w_t + b   (PyTorch nn.Linear(input_size, 1) forward).

    x:   (B, D)
    w_t: (D, 1)   -- PyTorch weight (1, D) stored transposed
    b:   (1,)
    Tile guidance: v7x can go larger (tk up to ~2048), v6e/v5e defaults are fine.
    """
    B, D = x.shape
    assert w_t.shape == (D, 1)

    # ---- batch tile (sublane-aligned); keep >=2 tiles for v7x megacore -------
    B8 = _round_up(B, 8)
    TB = min(_round_up(tb, 8), B8)
    if B8 >= 16 and _cdiv(B, TB) < 2:
        TB = _round_up(_cdiv(B8, 2), 8)

    # ---- K tile (lane-aligned) -----------------------------------------------
    D128 = _round_up(D, 128)
    TK = min(_round_up(tk, 128), D128)

    nb = _cdiv(B, TB)
    nk = _cdiv(D, TK)
    D_pad = nk * TK
    mask_needed = (D_pad != D)

    # ---- tiny weight row: pad + lay out lane-dense ---------------------------
    w_row = w_t.reshape(1, D).astype(x.dtype)
    if D_pad != D:
        w_row = jnp.pad(w_row, ((0, 0), (0, D_pad - D)))
    w_resident = (D_pad * jnp.dtype(x.dtype).itemsize) <= (4 << 20)
    if w_resident:
        w_arr = w_row.reshape(nk, TK)                       # whole row resident in VMEM
        w_spec = pl.BlockSpec((nk, TK), lambda i, k: (0, 0))
    else:
        w_arr = w_row                                       # streamed per-k chunk
        w_spec = pl.BlockSpec((1, TK), lambda i, k: (0, k))

    b1 = b.reshape(1).astype(jnp.float32)
    itemsize = jnp.dtype(x.dtype).itemsize

    kernel = _make_kernel(TK, D, mask_needed, w_resident)

    out = pl.pallas_call(
        kernel,
        out_shape=jax.ShapeDtypeStruct((B, 1), x.dtype),
        grid_spec=pltpu.PrefetchScalarGridSpec(
            num_scalar_prefetch=0,
            grid=(nb, nk),
            in_specs=[
                pl.BlockSpec((TB, TK), lambda i, k: (i, k)),        # x tiles (edge blocks ok)
                w_spec,                                             # weight row
                pl.BlockSpec(memory_space=pltpu.MemorySpace.SMEM),  # bias scalar
            ],
            out_specs=pl.BlockSpec((TB, 1), lambda i, k: (i, 0)),
            scratch_shapes=[pltpu.VMEM((TB, 128), jnp.float32)],    # lane-partial acc
        ),
        compiler_params=pltpu.CompilerParams(
            dimension_semantics=("parallel", "arbitrary"),
        ),
        cost_estimate=pl.CostEstimate(
            flops=2 * B * D,
            transcendentals=0,
            bytes_accessed=(B * D + D_pad + B) * itemsize,
        ),
    )(x, w_arr, b1)

    return out


if __name__ == "__main__":
    key = jax.random.PRNGKey(0)

    # --- primary test: small shapes implied by the module --------------------
    batch, input_size = 8, 32
    kx, kw, kb = jax.random.split(key, 3)
    x = jax.random.normal(kx, (batch, input_size), dtype=jnp.float32)

    # Deterministic init mimicking nn.Linear: U(-1/sqrt(in), 1/sqrt(in)).
    bound = 1.0 / jnp.sqrt(jnp.float32(input_size))
    w_t = jax.random.uniform(kw, (input_size, 1), dtype=jnp.float32,
                             minval=-bound, maxval=bound)
    b = jax.random.uniform(kb, (1,), dtype=jnp.float32,
                           minval=-bound, maxval=bound)

    y = linear_forward(x, w_t, b)
    jax.block_until_ready(y)
    y_ref = x @ w_t + b.reshape(1, 1)
    assert y.shape == (batch, 1)
    assert jnp.allclose(y, y_ref, atol=1e-5, rtol=1e-5)

    # --- secondary: non-divisible B & D -> batch-edge block, multi-k tiling,
    # --- lane masking on the K edge, megacore batch split ---------------------
    B2, D2 = 300, 3000
    k2x, k2w, k2b = jax.random.split(jax.random.PRNGKey(1), 3)
    x2 = jax.random.normal(k2x, (B2, D2), dtype=jnp.float32)
    w2 = jax.random.normal(k2w, (D2, 1), dtype=jnp.float32) * 0.05
    b2 = jax.random.normal(k2b, (1,), dtype=jnp.float32)

    y2 = linear_forward(x2, w2, b2)
    jax.block_until_ready(y2)
    y2_ref = x2 @ w2 + b2.reshape(1, 1)
    assert y2.shape == (B2, 1)
    assert jnp.allclose(y2, y2_ref, atol=1e-3, rtol=1e-4)

    print("KERNEL_OK")
</pallas_src>

<mosaic_0001>
module attributes {stable_mosaic.version = 11 : i64} {
  func.func @kernel(%arg0: i32, %arg1: i32, %arg2: memref<8x128xf32, #tpu.memory_space<vmem>>, %arg3: memref<1x128xf32, #tpu.memory_space<vmem>>, %arg4: memref<1xf32, #tpu.memory_space<smem>>, %arg5: memref<8x1xf32, #tpu.memory_space<vmem>>, %arg6: memref<8x128xf32, #tpu.memory_space<vmem>>) attributes {dimension_semantics = [#tpu.dimension_semantics<parallel>, #tpu.dimension_semantics<arbitrary>], iteration_bounds = array<i64: 1, 1>, scalar_prefetch = 0 : i64, scratch_operands = 1 : i64, tpu.core_type = #tpu.core_type<tc>, window_params = [{transform_indices = @transform_0, window_bounds = array<i64: 8, 128>}, {pipeline_mode = #tpu.pipeline_mode<synchronous>, transform_indices = @transform_1, window_bounds = array<i64: 1, 128>}, {transform_indices = @transform_2, window_bounds = array<i64: 1>}, {transform_indices = @transform_3, window_bounds = array<i64: 8, 1>}]} {
    %c0_i32 = arith.constant 0 : i32
    %0 = arith.cmpi eq, %arg1, %c0_i32 : i32
    %1 = arith.extui %0 : i1 to i32
    %c0_i32_0 = arith.constant 0 : i32
    %2 = arith.cmpi ne, %1, %c0_i32_0 : i32
    scf.if %2 {
      %cst_9 = arith.constant 0.000000e+00 : f32
      %24 = vector.broadcast %cst_9 : f32 to vector<8x128xf32>
      %c0_10 = arith.constant 0 : index
      %c0_11 = arith.constant 0 : index
      %25 = vector.load %arg6[%c0_10, %c0_11] : memref<8x128xf32, #tpu.memory_space<vmem>>, vector<8x128xf32>
      tpu.vector_store %arg6[%c0_10, %c0_11], %24 {strides = array<i32>} : memref<8x128xf32, #tpu.memory_space<vmem>>, vector<8x128xf32>,
    } else {
    }
    %c0 = arith.constant 0 : index
    %c0_1 = arith.constant 0 : index
    %3 = vector.load %arg2[%c0, %c0_1] : memref<8x128xf32, #tpu.memory_space<vmem>>, vector<8x128xf32>
    %4 = arith.index_cast %arg1 : i32 to index
    %c0_2 = arith.constant 0 : index
    %5 = vector.load %arg3[%4, %c0_2] : memref<1x128xf32, #tpu.memory_space<vmem>>, vector<1x128xf32>
    %6 = vector.shape_cast %5 : vector<1x128xf32> to vector<128xf32>
    %7 = vector.shape_cast %6 : vector<128xf32> to vector<1x128xf32>
    %8 = vector.broadcast %7 : vector<1x128xf32> to vector<8x128xf32>
    %9 = arith.mulf %3, %8 : vector<8x128xf32>
    %10 = tpu.iota {dimensions = array<i32: 1>} : vector<8x128xi32>
    %c128_i32 = arith.constant 128 : i32
    %11 = arith.muli %arg1, %c128_i32 : i32
    %12 = vector.broadcast %11 : i32 to vector<8x128xi32>
    %13 = arith.addi %12, %10 : vector<8x128xi32>
    %c32_i32 = arith.constant 32 : i32
    %14 = vector.broadcast %c32_i32 : i32 to vector<8x128xi32>
    %15 = arith.cmpi slt, %13, %14 : vector<8x128xi32>
    %cst = arith.constant 0.000000e+00 : f32
    %16 = vector.broadcast %cst : f32 to vector<8x128xf32>
    %17 = arith.select %15, %9, %16 : vector<8x128xi1>, vector<8x128xf32>
    %c0_3 = arith.constant 0 : index
    %c0_4 = arith.constant 0 : index
    %18 = vector.load %arg6[%c0_3, %c0_4] : memref<8x128xf32, #tpu.memory_space<vmem>>, vector<8x128xf32>
    %19 = arith.addf %18, %17 : vector<8x128xf32>
    %c0_5 = arith.constant 0 : index
    %c0_6 = arith.constant 0 : index
    %20 = vector.load %arg6[%c0_5, %c0_6] : memref<8x128xf32, #tpu.memory_space<vmem>>, vector<8x128xf32>
    tpu.vector_store %arg6[%c0_5, %c0_6], %19 {strides = array<i32>} : memref<8x128xf32, #tpu.memory_space<vmem>>, vector<8x128xf32>,
    %c0_i32_7 = arith.constant 0 : i32
    %21 = arith.cmpi eq, %arg1, %c0_i32_7 : i32
    %22 = arith.extui %21 : i1 to i32
    %c0_i32_8 = arith.constant 0 : i32
    %23 = arith.cmpi ne, %22, %c0_i32_8 : i32
    scf.if %23 {
      %c0_9 = arith.constant 0 : index
      %c0_10 = arith.constant 0 : index
      %24 = vector.load %arg6[%c0_9, %c0_10] : memref<8x128xf32, #tpu.memory_space<vmem>>, vector<8x128xf32>
      %cst_11 = arith.constant dense<0.000000e+00> : vector<8xf32>
      %25 = vector.multi_reduction <add>, %24, %cst_11 [1] : vector<8x128xf32> to vector<8xf32>
      %26 = vector.shape_cast %25 : vector<8xf32> to vector<8x1xf32>
      %c0_12 = arith.constant 0 : index
      %27 = memref.load %arg4[%c0_12] : memref<1xf32, #tpu.memory_space<smem>>
      %28 = vector.broadcast %27 : f32 to vector<8x1xf32>
      %29 = arith.addf %26, %28 : vector<8x1xf32>
      %c0_13 = arith.constant 0 : index
      %c0_14 = arith.constant 0 : index
      %30 = vector.load %arg5[%c0_13, %c0_14] : memref<8x1xf32, #tpu.memory_space<vmem>>, vector<8x1xf32>
      tpu.vector_store %arg5[%c0_13, %c0_14], %29 {strides = array<i32>} : memref<8x1xf32, #tpu.memory_space<vmem>>, vector<8x1xf32>,
    } else {
    }
    return
  }
  func.func @transform_0(%arg0: i32, %arg1: i32) -> (i32, i32) {
    %c0_i32 = arith.constant 0 : i32
    return %arg0, %arg1 : i32, i32
  }
  func.func @transform_1(%arg0: i32, %arg1: i32) -> (i32, i32) {
    %c0_i32 = arith.constant 0 : i32
    %c0_i32_0 = arith.constant 0 : i32
    %c0_i32_1 = arith.constant 0 : i32
    return %c0_i32, %c0_i32_0 : i32, i32
  }
  func.func @transform_2(%arg0: i32, %arg1: i32) -> i32 {
    %c0_i32 = arith.constant 0 : i32
    %c0_i32_0 = arith.constant 0 : i32
    return %c0_i32 : i32
  }
  func.func @transform_3(%arg0: i32, %arg1: i32) -> (i32, i32) {
    %c0_i32 = arith.constant 0 : i32
    %c0_i32_0 = arith.constant 0 : i32
    return %arg0, %c0_i32 : i32, i32
  }
}

</mosaic_0001>

<llo_original>
// kernel: tpu_custom_call.1
$region0: #{tpu_custom_call.1}
  #allocation0 [shape = 'u32[]', space=smem, size = 0x4, offset = 0x4, fixed_abs, tag = 'smem constant byte address 0x4 - core index']
  #allocation1 [shape = 'u32[144,128]{1,0:T(1,128)}', space=vmem, size = 0x12000, scoped, tag = 'internal scratch']
  #allocation2 [shape = 'f32[8,128]{1,0:T(8,128)}', space=vmem, size = 0x1000, scoped, tag = 'scratch operand']
  #allocation3 [shape = 'f32[1]{0:T(128)S(6)}', space=smem, size = 0x200, scoped, tag = 'scoped memory for tpu_custom_call.1']
  %s0 = inlined_call_operand.hbm [shape: f32[8,32], index: 0, kind: input, shape index: {}]
  %s1 = inlined_call_operand.vmem [shape: f32[1,128], index: 1, kind: input, shape index: {}]
  %s2 = inlined_call_operand.<no memory space> [shape: f32[1], index: 2, kind: input, shape index: {}]
  %s3 = inlined_call_operand.vmem [shape: f32[8,1], index: 3, kind: output, shape index: {}]
  %s4 = sld [smem:[#allocation0]]
  $region34: #{tpu_custom_call.1} parent=0
    _
  %s6 = ssub.s32 1, %s4
  %s7 = scalar_select 0, %s6, %s4
  %8 = sst [smem:[#allocation3]] %s2
  $region1: #{tpu_custom_call.1} parent=0
    #allocation4 [shape = 'u8[4096]{0}', space=vmem, size = 0x1000, scoped, tag = 'input window, operand 0, single buffered']
    #allocation5 [shape = 's32[1]{0}', space=sflag, size = 0x4, scoped, tag = 'scoped memory for tpu_custom_call.1']
    %9 = vsyncpa [#allocation5], 0
    // Predicated region
    $region2: #{tpu_custom_call.1} parent=1 // pred_check
      _
    $region3: #{tpu_custom_call.1} parent=1 // pred_check_branch
      %11 = sbr.rel (0) target = $region5
    $region4: #{tpu_custom_call.1} parent=1 // pred_region
      %s13 = ssub.s32 128, 128
      %14 = vsyncadd [#allocation5], %s13
      %s16 = sshll.u32 [#allocation4], 4
      %s17 = int_to_ptr.vmem [resolvable:$true] %s16
      %19 = dma.hbm_to_vmem [thread:$0]  %s0, 128, %s17, [#allocation5]
    $region5: #{tpu_custom_call.1} parent=1 // pred_fallthru
      _
    // Predicated region
    $region6: #{tpu_custom_call.1} parent=1 // pred_check
      _
    $region7: #{tpu_custom_call.1} parent=1 // pred_check_branch
      %21 = sbr.rel (0) target = $region9
    $region8: #{tpu_custom_call.1} parent=1 // pred_region
      _
    $region9: #{tpu_custom_call.1} parent=1 // pred_fallthru
      _
    // Predicated region
    $region10: #{tpu_custom_call.1} parent=1 // pred_check
      _
    $region11: #{tpu_custom_call.1} parent=1 // pred_check_branch
      %23 = sbr.rel (0) target = $region13
    $region12: #{tpu_custom_call.1} parent=1 // pred_region
      _
    $region13: #{tpu_custom_call.1} parent=1 // pred_fallthru
      _
    // Predicated region
    $region14: #{tpu_custom_call.1} parent=1 // pred_check
      _
    $region15: #{tpu_custom_call.1} parent=1 // pred_check_branch
      %25 = sbr.rel (0) target = $region17
    $region16: #{tpu_custom_call.1} parent=1 // pred_region
      %26 = dma.done [#allocation5], 128
    $region17: #{tpu_custom_call.1} parent=1 // pred_fallthru
      _
    %p27 = scmp.eq.s32.totalorder 0, 0
    // Predicated region
    $region18: #{tpu_custom_call.1} parent=1 // pred_check
      %p28 = pneg %p27
    $region19: #{tpu_custom_call.1} parent=1 // pred_check_branch
      %30 = sbr.rel (%p28) target = $region21
    $region20: #{tpu_custom_call.1} parent=1 // pred_region
      %31 = vst [vmem:[#allocation2] sm:$0xff] 0.0
    $region21: #{tpu_custom_call.1} parent=1 // pred_fallthru
      _
    %v32 = vld [vmem:[#allocation4] sm:$0xff]
    %v33 = vld [vmem:[%s1] sm:$0x1]
    %v35 = vlaneseq
    %v36 = vshrl.u32 %v35, 7
    %v37 = vsub.s32 0, %v36
    %v38 = vrot.slane %v33, %v37
    %v40 = vmul.f32 %v32, %v38
    %v41 = vlaneseq
    %v42 = vand.u32 %v41, 127
    %s43 = smul.u32 0, 128
    %v44 = vstv %s43
    %v45 = vadd.s32 %v44, %v42
    %vm46 = vcmp.lt.s32.totalorder %v45, 32
    %v47 = vsel %vm46, %v40, 0.0
    %v48 = vld [vmem:[#allocation2] sm:$0xff]
    %v49 = vadd.f32 %v48, %v47
    %50 = vst [vmem:[#allocation2] sm:$0xff] %v49
    // Predicated region
    $region22: #{tpu_custom_call.1} parent=1 // pred_check
      %p51 = pneg %p27
    $region23: #{tpu_custom_call.1} parent=1 // pred_check_branch
      %53 = sbr.rel (%p51) target = $region25
    $region24: #{tpu_custom_call.1} parent=1 // pred_region
      %v54 = vld [vmem:[#allocation2] sm:$0xff]
      %55 = vadd.xlane.f32.xlu0 %v54
      %v56 = vpop.xlane.xlu0 %55
      %s57 = sld [smem:[#allocation3]]
      %v58 = vstv %s57
      %v59 = vadd.f32 %v56, %v58
      %vm60 = vcmask 7168
      %61 = vst.msk [vmem:[%s3] sm:$0xff] %vm60, %v59
    $region25: #{tpu_custom_call.1} parent=1 // pred_fallthru
      _
    // Predicated region
    $region26: #{tpu_custom_call.1} parent=1 // pred_check
      _
    $region27: #{tpu_custom_call.1} parent=1 // pred_check_branch
      %63 = sbr.rel (0) target = $region29
    $region28: #{tpu_custom_call.1} parent=1 // pred_region
      _
    $region29: #{tpu_custom_call.1} parent=1 // pred_fallthru
      _
    // Predicated region
    $region30: #{tpu_custom_call.1} parent=1 // pred_check
      _
    $region31: #{tpu_custom_call.1} parent=1 // pred_check_branch
      %65 = sbr.rel (0) target = $region33
    $region32: #{tpu_custom_call.1} parent=1 // pred_region
      _
    $region33: #{tpu_custom_call.1} parent=1 // pred_fallthru
      _
    %66 = vsyncpa [#allocation5], 1

</llo_original>
